<compile_context>
chip_gen: v7x
topology: tpu7x:2x2x1
jax: 0.10.0
libtpu: 0.0.40
codegen_flags: <defaults>
</compile_context>

<pallas_src>
import functools

import jax
import jax.numpy as jnp
from jax.experimental import pallas as pl
from jax.experimental.pallas import tpu as pltpu

LANE = 128
SUBLANE = 8


def _round_up(n, m):
    return ((n + m - 1) // m) * m


def fake_news_mlp_kernel(x_ref, w1_ref, b1_ref, w2_ref, b2_ref, o_ref, *, output_size):
    # fc1 + ReLU: bf16 MXU matmul, f32 accumulate (hidden padded to 128 lanes).
    x = x_ref[...]                                              # (block_b, input_size) bf16
    h = jnp.dot(x, w1_ref[...], preferred_element_type=jnp.float32) + b1_ref[...]
    h = jnp.maximum(h, 0.0)
    # fc2: cast activations to bf16 for the MXU, accumulate in f32.
    logits = jnp.dot(h.astype(jnp.bfloat16), w2_ref[...],
                     preferred_element_type=jnp.float32) + b2_ref[...]
    # Mask padded output columns (robust replacement for the -1e30 bias trick).
    col = jax.lax.broadcasted_iota(jnp.int32, logits.shape, 1)
    logits = jnp.where(col < output_size, logits, -jnp.inf)
    # Numerically stable softmax over dim=1; masked columns exp() to exactly 0.
    m = jnp.max(logits, axis=1, keepdims=True)
    e = jnp.exp(logits - m)
    denom = jnp.sum(e, axis=1, keepdims=True)
    # Exact divide so rows sum to 1 (approx reciprocal broke normalization).
    o_ref[...] = (e / denom).astype(o_ref.dtype)


def prepare_params(w1, b1, w2, b2):
    """Pad/cast parameters ONCE (call outside the hot loop).

    Hidden dim is zero-padded 100 -> 128 (ReLU(0)=0 contributes nothing to fc2);
    output dim is zero-padded to 128 for lane-dense stores.  Weights are bf16
    (MXU-native on v5e/v6e/v7x), biases stay f32 for the f32 epilogue.
    """
    input_size, hidden = w1.shape
    output_size = w2.shape[1]
    hidden_p = _round_up(hidden, LANE)
    out_p = _round_up(output_size, LANE)

    w1p = jnp.zeros((input_size, hidden_p), jnp.bfloat16).at[:, :hidden].set(
        w1.astype(jnp.bfloat16))
    b1p = jnp.zeros((1, hidden_p), jnp.float32).at[:, :hidden].set(
        b1.reshape(1, hidden).astype(jnp.float32))
    w2p = jnp.zeros((hidden_p, out_p), jnp.bfloat16).at[:hidden, :output_size].set(
        w2.astype(jnp.bfloat16))
    b2p = jnp.zeros((1, out_p), jnp.float32).at[:, :output_size].set(
        b2.reshape(1, output_size).astype(jnp.float32))

    return {"w1p": w1p, "b1p": b1p, "w2p": w2p, "b2p": b2p,
            "output_size": output_size}


def fake_news_cnn_forward(x, params, *, block_b=None):
    """Forward pass.  `params` comes from prepare_params()."""
    w1p, b1p, w2p, b2p = params["w1p"], params["b1p"], params["w2p"], params["b2p"]
    output_size = params["output_size"]

    B, input_size = x.shape
    hidden_p = w1p.shape[1]
    out_p = w2p.shape[1]

    if block_b is None:
        # ~512-row tiles amortize the ~0.35us/step overhead, let the BlockSpec
        # pipeliner overlap x/out DMA with the dots, give >=2 grid steps for
        # megacore sharding on v7x, and stay far under v7x's 64 MiB VMEM
        # (per-row double-buffered cost is ~1.3 KB + ~160 KB resident weights).
        block_b = min(_round_up(B, SUBLANE), 512)
    block_b = _round_up(block_b, SUBLANE)

    # Handle non-divisible batches by padding rows (sliced off below).
    B_pad = _round_up(B, block_b)
    xb = x.astype(jnp.bfloat16)
    if B_pad != B:
        xb = jnp.zeros((B_pad, input_size), jnp.bfloat16).at[:B].set(xb)

    grid = (B_pad // block_b,)
    kernel = functools.partial(fake_news_mlp_kernel, output_size=output_size)

    out_padded = pl.pallas_call(
        kernel,
        out_shape=jax.ShapeDtypeStruct((B_pad, out_p), jnp.float32),
        grid_spec=pltpu.PrefetchScalarGridSpec(
            num_scalar_prefetch=0,
            grid=grid,
            in_specs=[
                pl.BlockSpec((block_b, input_size), lambda i: (i, 0)),
                pl.BlockSpec((input_size, hidden_p), lambda i: (0, 0)),
                pl.BlockSpec((1, hidden_p), lambda i: (0, 0)),
                pl.BlockSpec((hidden_p, out_p), lambda i: (0, 0)),
                pl.BlockSpec((1, out_p), lambda i: (0, 0)),
            ],
            out_specs=pl.BlockSpec((block_b, out_p), lambda i: (i, 0)),
        ),
        compiler_params=pltpu.CompilerParams(
            dimension_semantics=("parallel",),
        ),
    )(xb, w1p, b1p, w2p, b2p)

    # Padded logit columns are exactly 0; strip batch/output padding.
    # TODO(synk): for large-B consumers, keep the padded (B, 128) output and
    # fuse this slice into the consumer to avoid an extra HBM pass.
    return out_padded[:B, :output_size]


if __name__ == "__main__":
    B = 16
    INPUT_SIZE = 32
    HIDDEN = 100          # nn.Linear(input_size, 100)
    OUTPUT_SIZE = 4       # nn.Linear(100, output_size)

    key = jax.random.PRNGKey(0)
    kx, k1, k2, k3, k4 = jax.random.split(key, 5)

    x = jax.random.normal(kx, (B, INPUT_SIZE), dtype=jnp.float32)
    w1 = jax.random.normal(k1, (INPUT_SIZE, HIDDEN), dtype=jnp.float32) * 0.1
    b1 = jax.random.normal(k2, (1, HIDDEN), dtype=jnp.float32) * 0.01
    w2 = jax.random.normal(k3, (HIDDEN, OUTPUT_SIZE), dtype=jnp.float32) * 0.1
    b2 = jax.random.normal(k4, (1, OUTPUT_SIZE), dtype=jnp.float32) * 0.01

    params = prepare_params(w1, b1, w2, b2)   # pad/cast once, outside the hot loop
    out = fake_news_cnn_forward(x, params)
    out = jax.block_until_ready(out)

    # Full-precision reference (same math as the PyTorch forward).
    h_ref = jnp.maximum(x @ w1 + b1, 0.0)
    ref_f32 = jax.nn.softmax(h_ref @ w2 + b2, axis=1)

    # Reference mirroring the kernel's bf16 matmul inputs (tight check).
    h_bf = jnp.maximum(
        jnp.dot(x.astype(jnp.bfloat16), w1.astype(jnp.bfloat16),
                preferred_element_type=jnp.float32) + b1, 0.0)
    logits_bf = jnp.dot(h_bf.astype(jnp.bfloat16), w2.astype(jnp.bfloat16),
                        preferred_element_type=jnp.float32) + b2
    ref_bf16 = jax.nn.softmax(logits_bf, axis=1)

    assert out.shape == (B, OUTPUT_SIZE)
    assert jnp.allclose(out, ref_bf16, atol=2e-3, rtol=2e-3), "mismatch vs bf16-matmul reference"
    assert jnp.allclose(out, ref_f32, atol=2e-2, rtol=2e-2), "mismatch vs f32 reference"
    assert jnp.allclose(jnp.sum(out, axis=1), 1.0, atol=1e-3), "softmax rows must sum to 1"

    print("KERNEL_OK")
</pallas_src>

<mosaic_0001>
module attributes {stable_mosaic.version = 11 : i64} {
  func.func @fake_news_mlp_kernel(%arg0: i32, %arg1: memref<16x32xbf16, #tpu.memory_space<vmem>>, %arg2: memref<32x128xbf16, #tpu.memory_space<vmem>>, %arg3: memref<1x128xf32, #tpu.memory_space<vmem>>, %arg4: memref<128x128xbf16, #tpu.memory_space<vmem>>, %arg5: memref<1x128xf32, #tpu.memory_space<vmem>>, %arg6: memref<16x128xf32, #tpu.memory_space<vmem>>) attributes {dimension_semantics = [#tpu.dimension_semantics<parallel>], iteration_bounds = array<i64: 1>, scalar_prefetch = 0 : i64, scratch_operands = 0 : i64, tpu.core_type = #tpu.core_type<tc>, window_params = [{transform_indices = @transform_0, window_bounds = array<i64: 16, 32>}, {pipeline_mode = #tpu.pipeline_mode<synchronous>, transform_indices = @transform_1, window_bounds = array<i64: 32, 128>}, {pipeline_mode = #tpu.pipeline_mode<synchronous>, transform_indices = @transform_2, window_bounds = array<i64: 1, 128>}, {pipeline_mode = #tpu.pipeline_mode<synchronous>, transform_indices = @transform_3, window_bounds = array<i64: 128, 128>}, {pipeline_mode = #tpu.pipeline_mode<synchronous>, transform_indices = @transform_4, window_bounds = array<i64: 1, 128>}, {transform_indices = @transform_5, window_bounds = array<i64: 16, 128>}]} {
    %c0 = arith.constant 0 : index
    %c0_0 = arith.constant 0 : index
    %0 = vector.load %arg1[%c0, %c0_0] : memref<16x32xbf16, #tpu.memory_space<vmem>>, vector<16x32xbf16>
    %c0_1 = arith.constant 0 : index
    %c0_2 = arith.constant 0 : index
    %1 = vector.load %arg2[%c0_1, %c0_2] : memref<32x128xbf16, #tpu.memory_space<vmem>>, vector<32x128xbf16>
    %cst = arith.constant dense<0.000000e+00> : vector<16x128xf32>
    %2 = tpu.matmul %0, %1, %cst {dimension_numbers = #tpu.dot_dimension_numbers<[1], [0], [0], [1], [0, 0, 1, 1], [], []>} : vector<16x32xbf16>, vector<32x128xbf16>, vector<16x128xf32> -> vector<16x128xf32>
    %c0_3 = arith.constant 0 : index
    %c0_4 = arith.constant 0 : index
    %3 = vector.load %arg3[%c0_3, %c0_4] : memref<1x128xf32, #tpu.memory_space<vmem>>, vector<1x128xf32>
    %4 = vector.broadcast %3 : vector<1x128xf32> to vector<16x128xf32>
    %5 = arith.addf %2, %4 : vector<16x128xf32>
    %cst_5 = arith.constant 0.000000e+00 : f32
    %6 = vector.broadcast %cst_5 : f32 to vector<16x128xf32>
    %7 = arith.maximumf %5, %6 : vector<16x128xf32>
    %8 = arith.truncf %7 : vector<16x128xf32> to vector<16x128xbf16>
    %c0_6 = arith.constant 0 : index
    %c0_7 = arith.constant 0 : index
    %9 = vector.load %arg4[%c0_6, %c0_7] : memref<128x128xbf16, #tpu.memory_space<vmem>>, vector<128x128xbf16>
    %cst_8 = arith.constant dense<0.000000e+00> : vector<16x128xf32>
    %10 = tpu.matmul %8, %9, %cst_8 {dimension_numbers = #tpu.dot_dimension_numbers<[1], [0], [0], [1], [0, 0, 1, 1], [], []>} : vector<16x128xbf16>, vector<128x128xbf16>, vector<16x128xf32> -> vector<16x128xf32>
    %c0_9 = arith.constant 0 : index
    %c0_10 = arith.constant 0 : index
    %11 = vector.load %arg5[%c0_9, %c0_10] : memref<1x128xf32, #tpu.memory_space<vmem>>, vector<1x128xf32>
    %12 = vector.broadcast %11 : vector<1x128xf32> to vector<16x128xf32>
    %13 = arith.addf %10, %12 : vector<16x128xf32>
    %14 = tpu.iota {dimensions = array<i32: 1>} : vector<16x128xi32>
    %c4_i32 = arith.constant 4 : i32
    %15 = vector.broadcast %c4_i32 : i32 to vector<16x128xi32>
    %16 = arith.cmpi slt, %14, %15 : vector<16x128xi32>
    %cst_11 = arith.constant 0xFF800000 : f32
    %17 = vector.broadcast %cst_11 : f32 to vector<16x128xf32>
    %18 = arith.select %16, %13, %17 : vector<16x128xi1>, vector<16x128xf32>
    %cst_12 = arith.constant dense<0xFF800000> : vector<16xf32>
    %19 = vector.multi_reduction <maximumf>, %18, %cst_12 [1] : vector<16x128xf32> to vector<16xf32>
    %20 = vector.shape_cast %19 : vector<16xf32> to vector<16x1xf32>
    %21 = vector.broadcast %20 : vector<16x1xf32> to vector<16x128xf32>
    %22 = arith.subf %18, %21 : vector<16x128xf32>
    %23 = math.exp %22 : vector<16x128xf32>
    %cst_13 = arith.constant dense<0.000000e+00> : vector<16xf32>
    %24 = vector.multi_reduction <add>, %23, %cst_13 [1] : vector<16x128xf32> to vector<16xf32>
    %25 = vector.shape_cast %24 : vector<16xf32> to vector<16x1xf32>
    %26 = vector.broadcast %25 : vector<16x1xf32> to vector<16x128xf32>
    %27 = arith.divf %23, %26 : vector<16x128xf32>
    %c0_14 = arith.constant 0 : index
    %c0_15 = arith.constant 0 : index
    %28 = vector.load %arg6[%c0_14, %c0_15] : memref<16x128xf32, #tpu.memory_space<vmem>>, vector<16x128xf32>
    tpu.vector_store %arg6[%c0_14, %c0_15], %27 {strides = array<i32>} : memref<16x128xf32, #tpu.memory_space<vmem>>, vector<16x128xf32>,
    return
  }
  func.func @transform_0(%arg0: i32) -> (i32, i32) {
    %c0_i32 = arith.constant 0 : i32
    %c0_i32_0 = arith.constant 0 : i32
    return %arg0, %c0_i32 : i32, i32
  }
  func.func @transform_1(%arg0: i32) -> (i32, i32) {
    %c0_i32 = arith.constant 0 : i32
    %c0_i32_0 = arith.constant 0 : i32
    %c0_i32_1 = arith.constant 0 : i32
    return %c0_i32, %c0_i32_0 : i32, i32
  }
  func.func @transform_2(%arg0: i32) -> (i32, i32) {
    %c0_i32 = arith.constant 0 : i32
    %c0_i32_0 = arith.constant 0 : i32
    %c0_i32_1 = arith.constant 0 : i32
    return %c0_i32, %c0_i32_0 : i32, i32
  }
  func.func @transform_3(%arg0: i32) -> (i32, i32) {
    %c0_i32 = arith.constant 0 : i32
    %c0_i32_0 = arith.constant 0 : i32
    %c0_i32_1 = arith.constant 0 : i32
    return %c0_i32, %c0_i32_0 : i32, i32
  }
  func.func @transform_4(%arg0: i32) -> (i32, i32) {
    %c0_i32 = arith.constant 0 : i32
    %c0_i32_0 = arith.constant 0 : i32
    %c0_i32_1 = arith.constant 0 : i32
    return %c0_i32, %c0_i32_0 : i32, i32
  }
  func.func @transform_5(%arg0: i32) -> (i32, i32) {
    %c0_i32 = arith.constant 0 : i32
    %c0_i32_0 = arith.constant 0 : i32
    return %arg0, %c0_i32 : i32, i32
  }
}

</mosaic_0001>

<llo_original>
// kernel: tpu_custom_call.1
$region0: #{tpu_custom_call.1}
  #allocation0 [shape = 'u32[]', space=smem, size = 0x4, offset = 0x4, fixed_abs, tag = 'smem constant byte address 0x4 - core index']
  #allocation1 [shape = 'u32[144,128]{1,0:T(1,128)}', space=vmem, size = 0x12000, scoped, tag = 'internal scratch']
  %s0 = inlined_call_operand.hbm [shape: bf16[16,32], index: 0, kind: input, shape index: {}]
  %s1 = inlined_call_operand.hbm [shape: bf16[32,128], index: 1, kind: input, shape index: {}]
  %s2 = inlined_call_operand.vmem [shape: f32[1,128], index: 2, kind: input, shape index: {}]
  %s3 = inlined_call_operand.hbm [shape: bf16[128,128], index: 3, kind: input, shape index: {}]
  %s4 = inlined_call_operand.vmem [shape: f32[1,128], index: 4, kind: input, shape index: {}]
  %s5 = inlined_call_operand.hbm [shape: f32[16,128], index: 5, kind: output, shape index: {}]
  %s6 = sld [smem:[#allocation0]]
  $region42: #{tpu_custom_call.1} parent=0
    _
  %s8 = ssub.s32 1, %s6
  %s9 = scalar_select 0, %s8, %s6
  $region1: #{tpu_custom_call.1} parent=0
    #allocation2 [shape = 'u8[4096]{0}', space=vmem, size = 0x1000, scoped, tag = 'input window, operand 0, single buffered']
    #allocation3 [shape = 's32[1]{0}', space=sflag, size = 0x4, scoped, tag = 'scoped memory for tpu_custom_call.1']
    #allocation4 [shape = 's32[1]{0}', space=sflag, size = 0x4, scoped, tag = 'scoped memory for tpu_custom_call.1']
    #allocation5 [shape = 'u8[8192]{0}', space=vmem, size = 0x2000, scoped, tag = 'input window, operand 1, single buffered']
    #allocation6 [shape = 's32[1]{0}', space=sflag, size = 0x4, scoped, tag = 'scoped memory for tpu_custom_call.1']
    #allocation7 [shape = 'u8[32768]{0}', space=vmem, size = 0x8000, scoped, tag = 'input window, operand 3, single buffered']
    #allocation8 [shape = 'u8[8192]{0}', space=vmem, size = 0x2000, scoped, tag = 'output window, operand 0, single buffered']
    %10 = vsyncpa [#allocation3], 0
    %11 = vsyncpa [#allocation6], 0
    %12 = vsyncpa [#allocation4], 0
    // Predicated region
    $region2: #{tpu_custom_call.1} parent=1 // pred_check
      _
    $region3: #{tpu_custom_call.1} parent=1 // pred_check_branch
      %14 = sbr.rel (0) target = $region5
    $region4: #{tpu_custom_call.1} parent=1 // pred_region
      %s16 = ssub.s32 128, 128
      %17 = vsyncadd [#allocation3], %s16
      %s18 = sshll.u32 [#allocation2], 4
      %s19 = int_to_ptr.vmem [resolvable:$true] %s18
      %24 = dma.hbm_to_vmem [thread:$0]  %s0, 128, %s19, [#allocation3], 64, 64, 4
    $region5: #{tpu_custom_call.1} parent=1 // pred_fallthru
      _
    // Predicated region
    $region6: #{tpu_custom_call.1} parent=1 // pred_check
      _
    $region7: #{tpu_custom_call.1} parent=1 // pred_check_branch
      %26 = sbr.rel (0) target = $region9
    $region8: #{tpu_custom_call.1} parent=1 // pred_region
      %s28 = ssub.s32 256, 256
      %29 = vsyncadd [#allocation6], %s28
      %s30 = sshll.u32 [#allocation5], 4
      %s31 = int_to_ptr.vmem [resolvable:$true] %s30
      %36 = dma.hbm_to_vmem [thread:$0]  %s1, 256, %s31, [#allocation6], 64, 64, 4
    $region9: #{tpu_custom_call.1} parent=1 // pred_fallthru
      _
    // Predicated region
    $region10: #{tpu_custom_call.1} parent=1 // pred_check
      _
    $region11: #{tpu_custom_call.1} parent=1 // pred_check_branch
      %38 = sbr.rel (0) target = $region13
    $region12: #{tpu_custom_call.1} parent=1 // pred_region
      _
    $region13: #{tpu_custom_call.1} parent=1 // pred_fallthru
      _
    // Predicated region
    $region14: #{tpu_custom_call.1} parent=1 // pred_check
      _
    $region15: #{tpu_custom_call.1} parent=1 // pred_check_branch
      %40 = sbr.rel (0) target = $region17
    $region16: #{tpu_custom_call.1} parent=1 // pred_region
      %s42 = ssub.s32 1024, 1024
      %43 = vsyncadd [#allocation6], %s42
      %s44 = sshll.u32 [#allocation7], 4
      %s45 = int_to_ptr.vmem [resolvable:$true] %s44
      %50 = dma.hbm_to_vmem [thread:$0]  %s3, 1024, %s45, [#allocation6], 64, 64, 4
    $region17: #{tpu_custom_call.1} parent=1 // pred_fallthru
      _
    // Predicated region
    $region18: #{tpu_custom_call.1} parent=1 // pred_check
      _
    $region19: #{tpu_custom_call.1} parent=1 // pred_check_branch
      %52 = sbr.rel (0) target = $region21
    $region20: #{tpu_custom_call.1} parent=1 // pred_region
      _
    $region21: #{tpu_custom_call.1} parent=1 // pred_fallthru
      _
    // Predicated region
    $region22: #{tpu_custom_call.1} parent=1 // pred_check
      _
    $region23: #{tpu_custom_call.1} parent=1 // pred_check_branch
      %54 = sbr.rel (0) target = $region25
    $region24: #{tpu_custom_call.1} parent=1 // pred_region
      %55 = dma.done [#allocation3], 128
    $region25: #{tpu_custom_call.1} parent=1 // pred_fallthru
      _
    // Predicated region
    $region26: #{tpu_custom_call.1} parent=1 // pred_check
      _
    $region27: #{tpu_custom_call.1} parent=1 // pred_check_branch
      %57 = sbr.rel (0) target = $region29
    $region28: #{tpu_custom_call.1} parent=1 // pred_region
      %58 = dma.done [#allocation6], 256
    $region29: #{tpu_custom_call.1} parent=1 // pred_fallthru
      _
    // Predicated region
    $region30: #{tpu_custom_call.1} parent=1 // pred_check
      _
    $region31: #{tpu_custom_call.1} parent=1 // pred_check_branch
      %60 = sbr.rel (0) target = $region33
    $region32: #{tpu_custom_call.1} parent=1 // pred_region
      %61 = dma.done [#allocation6], 1024
    $region33: #{tpu_custom_call.1} parent=1 // pred_fallthru
      _
    %v63 = vld [vmem:[#allocation2] sm:$0xf]
    %v64 = vld [vmem:[#allocation2 + $0x4] sm:$0xf]
    %v65 = vld [vmem:[#allocation5] sm:$0xf]
    %v66 = vld [vmem:[#allocation5 + $0x4] sm:$0xf]
    %v67 = vld [vmem:[#allocation5 + $0x8] sm:$0xf]
    %v68 = vld [vmem:[#allocation5 + $0xc] sm:$0xf]
    %v69 = vld [vmem:[%s2] sm:$0x1]
    %v71 = vlaneseq
    %v72 = vshrl.u32 %v71, 7
    %v73 = vsub.s32 0, %v72
    %v74 = vrot.slane %v69, %v73
    %v78 = vunpack.c.l.b16 %v63
    %v79 = vunpack.c.l.b16 %v64
    %v80 = vpack.c.b16 %v79, %v78
    %v85 = vunpack.c.l.b16 %v65
    %v86 = vunpack.c.l.b16 %v66
    %v87 = vunpack.c.l.b16 %v67
    %v88 = vunpack.c.l.b16 %v68
    %v89 = vpack.c.b16 %v86, %v85
    %v90 = vpack.c.b16 %v88, %v87
    %vm93 = vcmask 261120
    %v95 = vsel %vm93, %v80, 0
    %97 = vmatprep.subr.bf16.mxu0 0
    %98 = vmatpush1.bf16.msra.mxu0 %v89
    %99 = vmatprep.subr.bf16.mxu0 0
    %100 = vmatpush1.bf16.msra.mxu0 %v90
    %101 = vmatprep.subr.bf16.mxu0 0
    %102 = vmatpush1.bf16.msra.mxu0 0
    %103 = vmatprep.subr.bf16.mxu0 0
    %104 = vmatpush1.bf16.msra.mxu0 0
    %105 = vmatprep.subr.bf16.mxu0 0
    %106 = vmatpush1.bf16.msra.mxu0 0
    %107 = vmatprep.subr.bf16.mxu0 0
    %108 = vmatpush1.bf16.msra.mxu0 0
    %109 = vmatprep.subr.bf16.mxu0 0
    %110 = vmatpush1.bf16.msra.mxu0 0
    %111 = vmatprep.subr.bf16.mxu0 0
    %112 = vmatpush1.bf16.msra.mxu0 0
    %113 = vmatprep.subr.bf16.mxu0 0
    %114 = vmatpush1.bf16.msra.mxu0 0
    %115 = vmatprep.subr.bf16.mxu0 0
    %116 = vmatpush1.bf16.msra.mxu0 0
    %117 = vmatprep.subr.bf16.mxu0 0
    %118 = vmatpush1.bf16.msra.mxu0 0
    %119 = vmatprep.subr.bf16.mxu0 0
    %120 = vmatpush1.bf16.msra.mxu0 0
    %121 = vmatprep.subr.bf16.mxu0 0
    %122 = vmatpush1.bf16.msra.mxu0 0
    %123 = vmatprep.subr.bf16.mxu0 0
    %124 = vmatpush1.bf16.msra.mxu0 0
    %125 = vmatprep.subr.bf16.mxu0 0
    %126 = vmatpush1.bf16.msra.mxu0 0
    %127 = vmatprep.subr.bf16.mxu0 0
    %128 = vmatpush1.bf16.msra.mxu0 0
    %129 = vmatprep.mubr.bf16.mxu0 0
    %130 = vmatmul.mubr.bf16.gmra.mrb[0].mxu0 %v95
    %v131 = vpop.f32.mrb[0].mxu0
    %v132 = vadd.f32 %v74, %v131
    %v133 = vpop.f32.mrb[0].mxu0
    %v134 = vpop.f32.mrb[0].mxu0
    %v135 = vadd.f32 %v74, %v134
    %v136 = vpop.f32.mrb[0].mxu0
    %137 = vdwg.mxu0
    %v138 = vmax.f32 %v132, 0.0
    %v139 = vmax.f32 %v135, 0.0
    %v140 = vpack.c.bf16 %v139, %v138
    %v141 = vld [vmem:[#allocation7] sm:$0xf]
    %v142 = vld [vmem:[#allocation7 + $0x4] sm:$0xf]
    %v143 = vld [vmem:[#allocation7 + $0x8] sm:$0xf]
    %v144 = vld [vmem:[#allocation7 + $0xc] sm:$0xf]
    %v145 = vld [vmem:[#allocation7 + $0x10] sm:$0xf]
    %v146 = vld [vmem:[#allocation7 + $0x14] sm:$0xf]
    %v147 = vld [vmem:[#allocation7 + $0x18] sm:$0xf]
    %v148 = vld [vmem:[#allocation7 + $0x1c] sm:$0xf]
    %v149 = vld [vmem:[#allocation7 + $0x20] sm:$0xf]
    %v150 = vld [vmem:[#allocation7 + $0x24] sm:$0xf]
    %v151 = vld [vmem:[#allocation7 + $0x28] sm:$0xf]
    %v152 = vld [vmem:[#allocation7 + $0x2c] sm:$0xf]
    %v153 = vld [vmem:[#allocation7 + $0x30] sm:$0xf]
    %v154 = vld [vmem:[#allocation7 + $0x34] sm:$0xf]
    %v155 = vld [vmem:[#allocation7 + $0x38] sm:$0xf]
    %v156 = vld [vmem:[#allocation7 + $0x3c] sm:$0xf]
    %v157 = vld [vmem:[%s4] sm:$0x1]
    %v159 = vlaneseq
    %v160 = vshrl.u32 %v159, 7
    %v161 = vsub.s32 0, %v160
    %v162 = vrot.slane %v157, %v161
    %v180 = vunpack.c.l.b16 %v141
    %v181 = vunpack.c.l.b16 %v142
    %v182 = vunpack.c.l.b16 %v143
    %v183 = vunpack.c.l.b16 %v144
    %v184 = vunpack.c.l.b16 %v145
    %v185 = vunpack.c.l.b16 %v146
    %v186 = vunpack.c.l.b16 %v147
    %v187 = vunpack.c.l.b16 %v148
    %v188 = vunpack.c.l.b16 %v149
    %v189 = vunpack.c.l.b16 %v150
    %v190 = vunpack.c.l.b16 %v151
    %v191 = vunpack.c.l.b16 %v152
    %v192 = vunpack.c.l.b16 %v153
    %v193 = vunpack.c.l.b16 %v154
    %v194 = vunpack.c.l.b16 %v155
    %v195 = vunpack.c.l.b16 %v156
    %v196 = vpack.c.b16 %v181, %v180
    %v197 = vpack.c.b16 %v183, %v182
    %v198 = vpack.c.b16 %v185, %v184
    %v199 = vpack.c.b16 %v187, %v186
    %v200 = vpack.c.b16 %v189, %v188
    %v201 = vpack.c.b16 %v191, %v190
    %v202 = vpack.c.b16 %v193, %v192
    %v203 = vpack.c.b16 %v195, %v194
    %212 = vmatprep.subr.bf16.mxu0 0
    %213 = vmatpush1.bf16.msra.mxu0 %v196
    %214 = vmatprep.subr.bf16.mxu0 0
    %215 = vmatpush1.bf16.msra.mxu0 %v197
    %216 = vmatprep.subr.bf16.mxu0 0
    %217 = vmatpush1.bf16.msra.mxu0 %v198
    %218 = vmatprep.subr.bf16.mxu0 0
    %219 = vmatpush1.bf16.msra.mxu0 %v199
    %220 = vmatprep.subr.bf16.mxu0 0
    %221 = vmatpush1.bf16.msra.mxu0 %v200
    %222 = vmatprep.subr.bf16.mxu0 0
    %223 = vmatpush1.bf16.msra.mxu0 %v201
    %224 = vmatprep.subr.bf16.mxu0 0
    %225 = vmatpush1.bf16.msra.mxu0 %v202
    %226 = vmatprep.subr.bf16.mxu0 0
    %227 = vmatpush1.bf16.msra.mxu0 %v203
    %228 = vmatprep.subr.bf16.mxu0 0
    %229 = vmatpush1.bf16.msra.mxu0 0
    %230 = vmatprep.subr.bf16.mxu0 0
    %231 = vmatpush1.bf16.msra.mxu0 0
    %232 = vmatprep.subr.bf16.mxu0 0
    %233 = vmatpush1.bf16.msra.mxu0 0
    %234 = vmatprep.subr.bf16.mxu0 0
    %235 = vmatpush1.bf16.msra.mxu0 0
    %236 = vmatprep.subr.bf16.mxu0 0
    %237 = vmatpush1.bf16.msra.mxu0 0
    %238 = vmatprep.subr.bf16.mxu0 0
    %239 = vmatpush1.bf16.msra.mxu0 0
    %240 = vmatprep.subr.bf16.mxu0 0
    %241 = vmatpush1.bf16.msra.mxu0 0
    %242 = vmatprep.subr.bf16.mxu0 0
    %243 = vmatpush1.bf16.msra.mxu0 0
    %244 = vmatprep.mubr.bf16.mxu0 0
    %245 = vmatmul.mubr.bf16.gmra.mrb[0].mxu0 %v140
    %v246 = vpop.f32.mrb[0].mxu0
    %v247 = vadd.f32 %v162, %v246
    %v248 = vpop.f32.mrb[0].mxu0
    %v249 = vpop.f32.mrb[0].mxu0
    %v250 = vadd.f32 %v162, %v249
    %v251 = vpop.f32.mrb[0].mxu0
    %252 = vdwg.mxu0
    %v253 = vlaneseq
    %v254 = vand.u32 %v253, 127
    %vm255 = vcmp.lt.s32.totalorder %v254, 4
    %v256 = vsel %vm255, %v247, -inf
    %v257 = vsel %vm255, %v250, -inf
    %258 = vmax.xlane.f32.xlu0 %v256
    %v259 = vpop.xlane.xlu0 %258
    %260 = vmax.xlane.f32.xlu0 %v257
    %v261 = vpop.xlane.xlu0 %260
    %v262 = vsub.f32 %v256, %v259
    %v263 = vsub.f32 %v257, %v261
    %v264 = vmul.f32 %v262, 1.442695
    %v265 = vpow.pop %v264
    %v266 = vmul.f32 %v263, 1.442695
    %v267 = vpow.pop %v266
    %268 = vadd.xlane.f32.xlu0 %v265
    %v269 = vpop.xlane.xlu0 %268
    %270 = vadd.xlane.f32.xlu0 %v267
    %v271 = vpop.xlane.xlu0 %270
    %v272 = vrcp.pop %v269
    %v273 = vmul.f32 %v265, %v272
    %v274 = vrcp.pop %v271
    %v275 = vmul.f32 %v267, %v274
    %276 = vst [vmem:[#allocation8] sm:$0xff] %v273
    %277 = vst [vmem:[#allocation8 + $0x8] sm:$0xff] %v275
    // Predicated region
    $region34: #{tpu_custom_call.1} parent=1 // pred_check
      _
    $region35: #{tpu_custom_call.1} parent=1 // pred_check_branch
      %279 = sbr.rel (0) target = $region37
    $region36: #{tpu_custom_call.1} parent=1 // pred_region
      %s281 = ssub.s32 256, 256
      %282 = vsyncadd [#allocation4], %s281
      %s283 = sshll.u32 [#allocation8], 4
      %s284 = int_to_ptr.vmem [resolvable:$true] %s283
      %289 = dma.vmem_to_hbm [thread:$0]  %s284, 256, %s5, [#allocation4], 128, 128, 8
    $region37: #{tpu_custom_call.1} parent=1 // pred_fallthru
      _
    // Predicated region
    $region38: #{tpu_custom_call.1} parent=1 // pred_check
      _
    $region39: #{tpu_custom_call.1} parent=1 // pred_check_branch
      %291 = sbr.rel (0) target = $region41
    $region40: #{tpu_custom_call.1} parent=1 // pred_region
      %292 = dma.done [#allocation4], 256
    $region41: #{tpu_custom_call.1} parent=1 // pred_fallthru
      _
    %293 = vsyncpa [#allocation3], 1
    %294 = vsyncpa [#allocation6], 1
    %295 = vsyncpa [#allocation4], 1

</llo_original>
